<compile_context>
chip_gen: v5e
topology: v5e:2x2
jax: 0.10.0
libtpu: 0.0.40
codegen_flags: <defaults>
</compile_context>

<pallas_src>
import functools

import jax
import jax.numpy as jnp
from jax import lax
from jax.experimental import pallas as pl
from jax.experimental.pallas import tpu as pltpu

N_STEPS = 50


def _conditional_linear_kernel(tm, unroll, y_ref, x_ref, w_ref, b_ref, emb_ref,
                               o_ref):
    n_steps = emb_ref.shape[0]
    base = pl.program_id(0) * tm

    # --- Embedding gather FIRST: y lives in SMEM (scalar prefetch).  Pull the
    # tm gamma rows this batch block needs directly into o_ref (no scratch, no
    # long-lived matmul result across the loop).
    def gather_row(j, carry):
        idx = y_ref[base + j]                       # SMEM scalar read
        idx = jnp.clip(idx, 0, n_steps - 1)         # cheap OOB insurance
        o_ref[pl.ds(j, 1), :] = emb_ref[pl.ds(idx, 1), :]   # dyn sublane load
        return carry

    lax.fori_loop(0, tm, gather_row, 0, unroll=unroll)

    # --- Linear on the MXU: (tm, num_in) @ (num_in, num_out) + (1, num_out),
    # then one full-tile VPU multiply against the gathered gammas.
    out = jnp.dot(x_ref[...], w_ref[...], preferred_element_type=jnp.float32)
    o_ref[...] = o_ref[...] * (out + b_ref[...])


def _pick_tm(batch):
    # Batch tile selection:
    #   * small batches -> one 8-sublane block (padded if needed)
    #   * B >= 16 -> largest tile that still leaves >= 2 grid blocks, so the
    #     "parallel" batch axis can use both TensorCores on v7x while staying
    #     large enough to amortize ~0.35 us/step grid overhead on v5e/v6e.
    if batch <= 8:
        return 8
    for cand in (512, 256, 128, 64, 32, 16, 8):
        if cand * 2 <= batch:
            return cand
    return 8


def conditional_linear(x, w, b, y, emb):
    """x: (B, num_in) f32; w: (num_in, num_out) f32 (nn.Linear weight already
    transposed); b: (1, num_out) f32; y: (B,) int32 timestep indices in
    [0, n_steps); emb: (n_steps, num_out) f32 embedding table."""
    B, num_in = x.shape
    num_out = w.shape[1]
    n_steps = emb.shape[0]

    y = y.astype(jnp.int32)

    tm = _pick_tm(B)
    b_pad = pl.cdiv(B, tm) * tm
    if b_pad != B:
        # Pad awkward batch sizes to a multiple of the tile: keeps sublanes a
        # multiple of 8, keeps the gather loop's SMEM reads in-bounds (padded
        # rows use index 0), result is sliced back below.
        x = jnp.pad(x, ((0, b_pad - B), (0, 0)))
        y = jnp.pad(y, (0, b_pad - B))
    grid_b = b_pad // tm

    # Fully unroll short gather loops; partial unroll for big tiles so scalar
    # reads / vld / vst interleave without blowing up code size.
    unroll = tm if tm <= 32 else 8

    kernel = functools.partial(_conditional_linear_kernel, tm, unroll)

    flops = 2 * b_pad * num_in * num_out
    bytes_accessed = 4 * (x.size + w.size + b.size + emb.size + y.size
                          + b_pad * num_out)

    # index_maps receive the scalar-prefetch ref (y) as a trailing positional
    # argument; only the kernel body uses it.
    out = pl.pallas_call(
        kernel,
        out_shape=jax.ShapeDtypeStruct((b_pad, num_out), jnp.float32),
        grid_spec=pltpu.PrefetchScalarGridSpec(
            num_scalar_prefetch=1,
            grid=(grid_b,),
            in_specs=[
                pl.BlockSpec((tm, num_in), lambda i, y_s: (i, 0)),
                pl.BlockSpec((num_in, num_out), lambda i, y_s: (0, 0)),
                pl.BlockSpec((1, num_out), lambda i, y_s: (0, 0)),
                pl.BlockSpec((n_steps, num_out), lambda i, y_s: (0, 0)),
            ],
            out_specs=pl.BlockSpec((tm, num_out), lambda i, y_s: (i, 0)),
        ),
        compiler_params=pltpu.CompilerParams(
            dimension_semantics=("parallel",),    # batch axis -> 2 TCs on v7x
            vmem_limit_bytes=32 * 1024 * 1024,
        ),
        cost_estimate=pl.CostEstimate(
            flops=flops, transcendentals=0, bytes_accessed=bytes_accessed),
    )(y, x, w, b, emb)

    return out[:B] if b_pad != B else out


def reference(x, w, b, y, emb):
    out = x @ w + b
    gamma = emb[y]
    return gamma * out


if __name__ == "__main__":
    # Lane-dense small shapes: last dims are multiples of 128.
    num_in, num_out, batch = 128, 128, 8

    key = jax.random.PRNGKey(0)
    k_x, k_y, k_w, k_b, k_e = jax.random.split(key, 5)

    # Deterministic "parameters" (shapes match nn.Linear / nn.Embedding init).
    bound = 1.0 / jnp.sqrt(jnp.float32(num_in))
    w = jax.random.uniform(k_w, (num_in, num_out), jnp.float32, -bound, bound)
    b = jax.random.uniform(k_b, (1, num_out), jnp.float32, -bound, bound)
    emb = jax.random.uniform(k_e, (N_STEPS, num_out), jnp.float32)  # .uniform_()

    # Inputs.
    x = jax.random.normal(k_x, (batch, num_in), jnp.float32)
    y = jax.random.randint(k_y, (batch,), 0, N_STEPS, jnp.int32)

    out = conditional_linear(x, w, b, y, emb)
    out = jax.block_until_ready(out)

    ref = reference(x, w, b, y, emb)
    assert out.shape == (batch, num_out)
    assert jnp.allclose(out, ref, atol=1e-5, rtol=1e-5)

    print("KERNEL_OK")
</pallas_src>

<mosaic_0001>
module attributes {stable_mosaic.version = 11 : i64} {
  func.func @_conditional_linear_kernel(%arg0: i32, %arg1: memref<8xi32, #tpu.memory_space<smem>>, %arg2: memref<8x128xf32, #tpu.memory_space<vmem>>, %arg3: memref<128x128xf32, #tpu.memory_space<vmem>>, %arg4: memref<1x128xf32, #tpu.memory_space<vmem>>, %arg5: memref<50x128xf32, #tpu.memory_space<vmem>>, %arg6: memref<8x128xf32, #tpu.memory_space<vmem>>) attributes {dimension_semantics = [#tpu.dimension_semantics<parallel>], iteration_bounds = array<i64: 1>, scalar_prefetch = 1 : i64, scratch_operands = 0 : i64, tpu.core_type = #tpu.core_type<tc>, window_params = [{transform_indices = @transform_0, window_bounds = array<i64: 8, 128>}, {pipeline_mode = #tpu.pipeline_mode<synchronous>, transform_indices = @transform_1, window_bounds = array<i64: 128, 128>}, {pipeline_mode = #tpu.pipeline_mode<synchronous>, transform_indices = @transform_2, window_bounds = array<i64: 1, 128>}, {pipeline_mode = #tpu.pipeline_mode<synchronous>, transform_indices = @transform_3, window_bounds = array<i64: 50, 128>}, {transform_indices = @transform_4, window_bounds = array<i64: 8, 128>}]} {
    %c8_i32 = arith.constant 8 : i32
    %0 = arith.muli %arg0, %c8_i32 : i32
    %c0_i32 = arith.constant 0 : i32
    %1 = arith.addi %0, %c0_i32 : i32
    %2 = arith.index_cast %1 : i32 to index
    %3 = memref.load %arg1[%2] : memref<8xi32, #tpu.memory_space<smem>>
    %c0_i32_0 = arith.constant 0 : i32
    %c49_i32 = arith.constant 49 : i32
    %4 = arith.maxsi %c0_i32_0, %3 : i32
    %5 = arith.minsi %c49_i32, %4 : i32
    %6 = arith.index_cast %5 : i32 to index
    %c0 = arith.constant 0 : index
    %7 = vector.load %arg5[%6, %c0] : memref<50x128xf32, #tpu.memory_space<vmem>>, vector<1x128xf32>
    %8 = arith.index_cast %c0_i32 : i32 to index
    %c0_1 = arith.constant 0 : index
    %9 = vector.load %arg6[%8, %c0_1] : memref<8x128xf32, #tpu.memory_space<vmem>>, vector<1x128xf32>
    tpu.vector_store %arg6[%8, %c0_1], %7 {strides = array<i32>} : memref<8x128xf32, #tpu.memory_space<vmem>>, vector<1x128xf32>,
    %c1_i32 = arith.constant 1 : i32
    %10 = arith.addi %0, %c1_i32 : i32
    %11 = arith.index_cast %10 : i32 to index
    %12 = memref.load %arg1[%11] : memref<8xi32, #tpu.memory_space<smem>>
    %c0_i32_2 = arith.constant 0 : i32
    %c49_i32_3 = arith.constant 49 : i32
    %13 = arith.maxsi %c0_i32_2, %12 : i32
    %14 = arith.minsi %c49_i32_3, %13 : i32
    %15 = arith.index_cast %14 : i32 to index
    %c0_4 = arith.constant 0 : index
    %16 = vector.load %arg5[%15, %c0_4] : memref<50x128xf32, #tpu.memory_space<vmem>>, vector<1x128xf32>
    %17 = arith.index_cast %c1_i32 : i32 to index
    %c0_5 = arith.constant 0 : index
    %18 = vector.load %arg6[%17, %c0_5] : memref<8x128xf32, #tpu.memory_space<vmem>>, vector<1x128xf32>
    tpu.vector_store %arg6[%17, %c0_5], %16 {strides = array<i32>} : memref<8x128xf32, #tpu.memory_space<vmem>>, vector<1x128xf32>,
    %c2_i32 = arith.constant 2 : i32
    %19 = arith.addi %0, %c2_i32 : i32
    %20 = arith.index_cast %19 : i32 to index
    %21 = memref.load %arg1[%20] : memref<8xi32, #tpu.memory_space<smem>>
    %c0_i32_6 = arith.constant 0 : i32
    %c49_i32_7 = arith.constant 49 : i32
    %22 = arith.maxsi %c0_i32_6, %21 : i32
    %23 = arith.minsi %c49_i32_7, %22 : i32
    %24 = arith.index_cast %23 : i32 to index
    %c0_8 = arith.constant 0 : index
    %25 = vector.load %arg5[%24, %c0_8] : memref<50x128xf32, #tpu.memory_space<vmem>>, vector<1x128xf32>
    %26 = arith.index_cast %c2_i32 : i32 to index
    %c0_9 = arith.constant 0 : index
    %27 = vector.load %arg6[%26, %c0_9] : memref<8x128xf32, #tpu.memory_space<vmem>>, vector<1x128xf32>
    tpu.vector_store %arg6[%26, %c0_9], %25 {strides = array<i32>} : memref<8x128xf32, #tpu.memory_space<vmem>>, vector<1x128xf32>,
    %c3_i32 = arith.constant 3 : i32
    %28 = arith.addi %0, %c3_i32 : i32
    %29 = arith.index_cast %28 : i32 to index
    %30 = memref.load %arg1[%29] : memref<8xi32, #tpu.memory_space<smem>>
    %c0_i32_10 = arith.constant 0 : i32
    %c49_i32_11 = arith.constant 49 : i32
    %31 = arith.maxsi %c0_i32_10, %30 : i32
    %32 = arith.minsi %c49_i32_11, %31 : i32
    %33 = arith.index_cast %32 : i32 to index
    %c0_12 = arith.constant 0 : index
    %34 = vector.load %arg5[%33, %c0_12] : memref<50x128xf32, #tpu.memory_space<vmem>>, vector<1x128xf32>
    %35 = arith.index_cast %c3_i32 : i32 to index
    %c0_13 = arith.constant 0 : index
    %36 = vector.load %arg6[%35, %c0_13] : memref<8x128xf32, #tpu.memory_space<vmem>>, vector<1x128xf32>
    tpu.vector_store %arg6[%35, %c0_13], %34 {strides = array<i32>} : memref<8x128xf32, #tpu.memory_space<vmem>>, vector<1x128xf32>,
    %c4_i32 = arith.constant 4 : i32
    %37 = arith.addi %0, %c4_i32 : i32
    %38 = arith.index_cast %37 : i32 to index
    %39 = memref.load %arg1[%38] : memref<8xi32, #tpu.memory_space<smem>>
    %c0_i32_14 = arith.constant 0 : i32
    %c49_i32_15 = arith.constant 49 : i32
    %40 = arith.maxsi %c0_i32_14, %39 : i32
    %41 = arith.minsi %c49_i32_15, %40 : i32
    %42 = arith.index_cast %41 : i32 to index
    %c0_16 = arith.constant 0 : index
    %43 = vector.load %arg5[%42, %c0_16] : memref<50x128xf32, #tpu.memory_space<vmem>>, vector<1x128xf32>
    %44 = arith.index_cast %c4_i32 : i32 to index
    %c0_17 = arith.constant 0 : index
    %45 = vector.load %arg6[%44, %c0_17] : memref<8x128xf32, #tpu.memory_space<vmem>>, vector<1x128xf32>
    tpu.vector_store %arg6[%44, %c0_17], %43 {strides = array<i32>} : memref<8x128xf32, #tpu.memory_space<vmem>>, vector<1x128xf32>,
    %c5_i32 = arith.constant 5 : i32
    %46 = arith.addi %0, %c5_i32 : i32
    %47 = arith.index_cast %46 : i32 to index
    %48 = memref.load %arg1[%47] : memref<8xi32, #tpu.memory_space<smem>>
    %c0_i32_18 = arith.constant 0 : i32
    %c49_i32_19 = arith.constant 49 : i32
    %49 = arith.maxsi %c0_i32_18, %48 : i32
    %50 = arith.minsi %c49_i32_19, %49 : i32
    %51 = arith.index_cast %50 : i32 to index
    %c0_20 = arith.constant 0 : index
    %52 = vector.load %arg5[%51, %c0_20] : memref<50x128xf32, #tpu.memory_space<vmem>>, vector<1x128xf32>
    %53 = arith.index_cast %c5_i32 : i32 to index
    %c0_21 = arith.constant 0 : index
    %54 = vector.load %arg6[%53, %c0_21] : memref<8x128xf32, #tpu.memory_space<vmem>>, vector<1x128xf32>
    tpu.vector_store %arg6[%53, %c0_21], %52 {strides = array<i32>} : memref<8x128xf32, #tpu.memory_space<vmem>>, vector<1x128xf32>,
    %c6_i32 = arith.constant 6 : i32
    %55 = arith.addi %0, %c6_i32 : i32
    %56 = arith.index_cast %55 : i32 to index
    %57 = memref.load %arg1[%56] : memref<8xi32, #tpu.memory_space<smem>>
    %c0_i32_22 = arith.constant 0 : i32
    %c49_i32_23 = arith.constant 49 : i32
    %58 = arith.maxsi %c0_i32_22, %57 : i32
    %59 = arith.minsi %c49_i32_23, %58 : i32
    %60 = arith.index_cast %59 : i32 to index
    %c0_24 = arith.constant 0 : index
    %61 = vector.load %arg5[%60, %c0_24] : memref<50x128xf32, #tpu.memory_space<vmem>>, vector<1x128xf32>
    %62 = arith.index_cast %c6_i32 : i32 to index
    %c0_25 = arith.constant 0 : index
    %63 = vector.load %arg6[%62, %c0_25] : memref<8x128xf32, #tpu.memory_space<vmem>>, vector<1x128xf32>
    tpu.vector_store %arg6[%62, %c0_25], %61 {strides = array<i32>} : memref<8x128xf32, #tpu.memory_space<vmem>>, vector<1x128xf32>,
    %c7_i32 = arith.constant 7 : i32
    %64 = arith.addi %0, %c7_i32 : i32
    %65 = arith.index_cast %64 : i32 to index
    %66 = memref.load %arg1[%65] : memref<8xi32, #tpu.memory_space<smem>>
    %c0_i32_26 = arith.constant 0 : i32
    %c49_i32_27 = arith.constant 49 : i32
    %67 = arith.maxsi %c0_i32_26, %66 : i32
    %68 = arith.minsi %c49_i32_27, %67 : i32
    %69 = arith.index_cast %68 : i32 to index
    %c0_28 = arith.constant 0 : index
    %70 = vector.load %arg5[%69, %c0_28] : memref<50x128xf32, #tpu.memory_space<vmem>>, vector<1x128xf32>
    %71 = arith.index_cast %c7_i32 : i32 to index
    %c0_29 = arith.constant 0 : index
    %72 = vector.load %arg6[%71, %c0_29] : memref<8x128xf32, #tpu.memory_space<vmem>>, vector<1x128xf32>
    tpu.vector_store %arg6[%71, %c0_29], %70 {strides = array<i32>} : memref<8x128xf32, #tpu.memory_space<vmem>>, vector<1x128xf32>,
    %c8_i32_30 = arith.constant 8 : i32
    %c0_31 = arith.constant 0 : index
    %c0_32 = arith.constant 0 : index
    %73 = vector.load %arg2[%c0_31, %c0_32] : memref<8x128xf32, #tpu.memory_space<vmem>>, vector<8x128xf32>
    %c0_33 = arith.constant 0 : index
    %c0_34 = arith.constant 0 : index
    %74 = vector.load %arg3[%c0_33, %c0_34] : memref<128x128xf32, #tpu.memory_space<vmem>>, vector<128x128xf32>
    %cst = arith.constant dense<0.000000e+00> : vector<8x128xf32>
    %75 = tpu.matmul %73, %74, %cst {dimension_numbers = #tpu.dot_dimension_numbers<[1], [0], [0], [1], [0, 0, 1, 1], [], []>} : vector<8x128xf32>, vector<128x128xf32>, vector<8x128xf32> -> vector<8x128xf32>
    %c0_35 = arith.constant 0 : index
    %c0_36 = arith.constant 0 : index
    %76 = vector.load %arg6[%c0_35, %c0_36] : memref<8x128xf32, #tpu.memory_space<vmem>>, vector<8x128xf32>
    %c0_37 = arith.constant 0 : index
    %c0_38 = arith.constant 0 : index
    %77 = vector.load %arg4[%c0_37, %c0_38] : memref<1x128xf32, #tpu.memory_space<vmem>>, vector<1x128xf32>
    %78 = vector.broadcast %77 : vector<1x128xf32> to vector<8x128xf32>
    %79 = arith.addf %75, %78 : vector<8x128xf32>
    %80 = arith.mulf %76, %79 : vector<8x128xf32>
    %c0_39 = arith.constant 0 : index
    %c0_40 = arith.constant 0 : index
    %81 = vector.load %arg6[%c0_39, %c0_40] : memref<8x128xf32, #tpu.memory_space<vmem>>, vector<8x128xf32>
    tpu.vector_store %arg6[%c0_39, %c0_40], %80 {strides = array<i32>} : memref<8x128xf32, #tpu.memory_space<vmem>>, vector<8x128xf32>,
    return
  }
  func.func @transform_0(%arg0: i32, %arg1: memref<8xi32, #tpu.memory_space<smem>>) -> (i32, i32) {
    %c0_i32 = arith.constant 0 : i32
    %c0_i32_0 = arith.constant 0 : i32
    return %arg0, %c0_i32 : i32, i32
  }
  func.func @transform_1(%arg0: i32, %arg1: memref<8xi32, #tpu.memory_space<smem>>) -> (i32, i32) {
    %c0_i32 = arith.constant 0 : i32
    %c0_i32_0 = arith.constant 0 : i32
    %c0_i32_1 = arith.constant 0 : i32
    return %c0_i32, %c0_i32_0 : i32, i32
  }
  func.func @transform_2(%arg0: i32, %arg1: memref<8xi32, #tpu.memory_space<smem>>) -> (i32, i32) {
    %c0_i32 = arith.constant 0 : i32
    %c0_i32_0 = arith.constant 0 : i32
    %c0_i32_1 = arith.constant 0 : i32
    return %c0_i32, %c0_i32_0 : i32, i32
  }
  func.func @transform_3(%arg0: i32, %arg1: memref<8xi32, #tpu.memory_space<smem>>) -> (i32, i32) {
    %c0_i32 = arith.constant 0 : i32
    %c0_i32_0 = arith.constant 0 : i32
    %c0_i32_1 = arith.constant 0 : i32
    return %c0_i32, %c0_i32_0 : i32, i32
  }
  func.func @transform_4(%arg0: i32, %arg1: memref<8xi32, #tpu.memory_space<smem>>) -> (i32, i32) {
    %c0_i32 = arith.constant 0 : i32
    %c0_i32_0 = arith.constant 0 : i32
    return %arg0, %c0_i32 : i32, i32
  }
}

</mosaic_0001>

<llo_original>
// kernel: tpu_custom_call.1
$region0: #{tpu_custom_call.1}
  #allocation0 [shape = 'u32[]', space=smem, size = 0x4, offset = 0x4, fixed_abs, tag = 'smem constant byte address 0x4 - core index']
  #allocation1 [shape = 'u32[72,128]{1,0:T(1,128)}', space=vmem, size = 0x9000, scoped, tag = 'internal scratch']
  #allocation2 [shape = 's32[1]{0}', space=sflag, size = 0x4, scoped, tag = 'scoped memory for tpu_custom_call.1']
  #allocation3 [shape = 'u8[512]{0}', space=smem, size = 0x200, scoped, tag = 'prefetched SMEM operand 0']
  %s0 = inlined_call_operand.hbm [shape: s32[8], index: 0, kind: input, shape index: {}]
  %s1 = inlined_call_operand.hbm [shape: f32[8,128], index: 1, kind: input, shape index: {}]
  %s2 = inlined_call_operand.hbm [shape: f32[128,128], index: 2, kind: input, shape index: {}]
  %s3 = inlined_call_operand.vmem [shape: f32[1,128], index: 3, kind: input, shape index: {}]
  %s4 = inlined_call_operand.hbm [shape: f32[50,128], index: 4, kind: input, shape index: {}]
  %s5 = inlined_call_operand.hbm [shape: f32[8,128], index: 5, kind: output, shape index: {}]
  %s6 = sld [smem:[#allocation0]]
  $region38: #{tpu_custom_call.1} parent=0
    _
  %s8 = ssub.s32 1, %s6
  %s9 = scalar_select 0, %s8, %s6
  %s11 = sshll.u32 %s0, 4
  %s12 = int_to_ptr.hbm [resolvable:$true] %s11
  %14 = dma.hbm_to_smem %s12, 16, [#allocation3], [#allocation2]
  %16 = dma.done [#allocation2], 16
  %17 = sfence
  $region1: #{tpu_custom_call.1} parent=0
    #allocation4 [shape = 'u8[4096]{0}', space=vmem, size = 0x1000, scoped, tag = 'input window, operand 1, single buffered']
    #allocation5 [shape = 's32[1]{0}', space=sflag, size = 0x4, scoped, tag = 'scoped memory for tpu_custom_call.1']
    #allocation6 [shape = 's32[1]{0}', space=sflag, size = 0x4, scoped, tag = 'scoped memory for tpu_custom_call.1']
    #allocation7 [shape = 'u8[65536]{0}', space=vmem, size = 0x10000, scoped, tag = 'input window, operand 2, single buffered']
    #allocation8 [shape = 's32[1]{0}', space=sflag, size = 0x4, scoped, tag = 'scoped memory for tpu_custom_call.1']
    #allocation9 [shape = 'u8[28672]{0}', space=vmem, size = 0x7000, scoped, tag = 'input window, operand 4, single buffered']
    #allocation10 [shape = 'u8[4096]{0}', space=vmem, size = 0x1000, scoped, tag = 'output window, operand 0, single buffered']
    %18 = vsyncpa [#allocation5], 0
    %19 = vsyncpa [#allocation8], 0
    %20 = vsyncpa [#allocation6], 0
    // Predicated region
    $region2: #{tpu_custom_call.1} parent=1 // pred_check
      _
    $region3: #{tpu_custom_call.1} parent=1 // pred_check_branch
      %22 = sbr.rel (0) target = $region5
    $region4: #{tpu_custom_call.1} parent=1 // pred_region
      %24 = vsyncadd [#allocation5], 0
      %s26 = sshll.u32 %s1, 4
      %s27 = int_to_ptr.hbm [resolvable:$true] %s26
      %s28 = sshll.u32 [#allocation4], 4
      %s29 = int_to_ptr.vmem [resolvable:$true] %s28
      %31 = dma.hbm_to_vmem [thread:$0]  %s27, 128, %s29, [#allocation5]
    $region5: #{tpu_custom_call.1} parent=1 // pred_fallthru
      _
    // Predicated region
    $region6: #{tpu_custom_call.1} parent=1 // pred_check
      _
    $region7: #{tpu_custom_call.1} parent=1 // pred_check_branch
      %33 = sbr.rel (0) target = $region9
    $region8: #{tpu_custom_call.1} parent=1 // pred_region
      %35 = vsyncadd [#allocation8], 0
      %s36 = sshll.u32 %s2, 4
      %s37 = int_to_ptr.hbm [resolvable:$true] %s36
      %s38 = sshll.u32 [#allocation7], 4
      %s39 = int_to_ptr.vmem [resolvable:$true] %s38
      %44 = dma.hbm_to_vmem [thread:$0]  %s37, 2048, %s39, [#allocation8], 128, 128, 8
    $region9: #{tpu_custom_call.1} parent=1 // pred_fallthru
      _
    // Predicated region
    $region10: #{tpu_custom_call.1} parent=1 // pred_check
      _
    $region11: #{tpu_custom_call.1} parent=1 // pred_check_branch
      %46 = sbr.rel (0) target = $region13
    $region12: #{tpu_custom_call.1} parent=1 // pred_region
      _
    $region13: #{tpu_custom_call.1} parent=1 // pred_fallthru
      _
    // Predicated region
    $region14: #{tpu_custom_call.1} parent=1 // pred_check
      _
    $region15: #{tpu_custom_call.1} parent=1 // pred_check_branch
      %48 = sbr.rel (0) target = $region17
    $region16: #{tpu_custom_call.1} parent=1 // pred_region
      %50 = vsyncadd [#allocation8], 0
      %s51 = sshll.u32 %s4, 4
      %s52 = int_to_ptr.hbm [resolvable:$true] %s51
      %s53 = sshll.u32 [#allocation9], 4
      %s54 = int_to_ptr.vmem [resolvable:$true] %s53
      %59 = dma.hbm_to_vmem [thread:$0]  %s52, 896, %s54, [#allocation8], 128, 128, 8
    $region17: #{tpu_custom_call.1} parent=1 // pred_fallthru
      _
    // Predicated region
    $region18: #{tpu_custom_call.1} parent=1 // pred_check
      _
    $region19: #{tpu_custom_call.1} parent=1 // pred_check_branch
      %61 = sbr.rel (0) target = $region21
    $region20: #{tpu_custom_call.1} parent=1 // pred_region
      %63 = dma.done [#allocation5], 128
    $region21: #{tpu_custom_call.1} parent=1 // pred_fallthru
      _
    // Predicated region
    $region22: #{tpu_custom_call.1} parent=1 // pred_check
      _
    $region23: #{tpu_custom_call.1} parent=1 // pred_check_branch
      %65 = sbr.rel (0) target = $region25
    $region24: #{tpu_custom_call.1} parent=1 // pred_region
      %67 = dma.done [#allocation8], 2048
    $region25: #{tpu_custom_call.1} parent=1 // pred_fallthru
      _
    // Predicated region
    $region26: #{tpu_custom_call.1} parent=1 // pred_check
      _
    $region27: #{tpu_custom_call.1} parent=1 // pred_check_branch
      %69 = sbr.rel (0) target = $region29
    $region28: #{tpu_custom_call.1} parent=1 // pred_region
      %71 = dma.done [#allocation8], 896
    $region29: #{tpu_custom_call.1} parent=1 // pred_fallthru
      _
    %s72 = smul.u32 0, 8
    %s73 = sld [smem:[#allocation3 + %s72]]
    %p74 = scmp.gt.s32.totalorder %s73, 0
    %s75 = scalar_select %p74, %s73, 0
    %p76 = scmp.lt.s32.totalorder %s75, 49
    %s77 = scalar_select %p76, %s75, 49
    %s78 = scalar_lea.vmem [#allocation9], %s77
    %v79 = vld [vmem:[%s78] sm:$0x1]
    %80 = vst [vmem:[#allocation10] sm:$0x1] %v79
    %s81 = sadd.s32 %s72, 1
    %s82 = sld [smem:[#allocation3 + %s81]]
    %p83 = scmp.gt.s32.totalorder %s82, 0
    %s84 = scalar_select %p83, %s82, 0
    %p85 = scmp.lt.s32.totalorder %s84, 49
    %s86 = scalar_select %p85, %s84, 49
    %s87 = scalar_lea.vmem [#allocation9], %s86
    %v88 = vld [vmem:[%s87] sm:$0x1]
    %89 = vst [vmem:[#allocation10 + $0x1] sm:$0x1] %v88
    %s90 = sadd.s32 %s72, 2
    %s91 = sld [smem:[#allocation3 + %s90]]
    %p92 = scmp.gt.s32.totalorder %s91, 0
    %s93 = scalar_select %p92, %s91, 0
    %p94 = scmp.lt.s32.totalorder %s93, 49
    %s95 = scalar_select %p94, %s93, 49
    %s96 = scalar_lea.vmem [#allocation9], %s95
    %v97 = vld [vmem:[%s96] sm:$0x1]
    %98 = vst [vmem:[#allocation10 + $0x2] sm:$0x1] %v97
    %s99 = sadd.s32 %s72, 3
    %s100 = sld [smem:[#allocation3 + %s99]]
    %p101 = scmp.gt.s32.totalorder %s100, 0
    %s102 = scalar_select %p101, %s100, 0
    %p103 = scmp.lt.s32.totalorder %s102, 49
    %s104 = scalar_select %p103, %s102, 49
    %s105 = scalar_lea.vmem [#allocation9], %s104
    %v106 = vld [vmem:[%s105] sm:$0x1]
    %107 = vst [vmem:[#allocation10 + $0x3] sm:$0x1] %v106
    %s108 = sadd.s32 %s72, 4
    %s109 = sld [smem:[#allocation3 + %s108]]
    %p110 = scmp.gt.s32.totalorder %s109, 0
    %s111 = scalar_select %p110, %s109, 0
    %p112 = scmp.lt.s32.totalorder %s111, 49
    %s113 = scalar_select %p112, %s111, 49
    %s114 = scalar_lea.vmem [#allocation9], %s113
    %v115 = vld [vmem:[%s114] sm:$0x1]
    %116 = vst [vmem:[#allocation10 + $0x4] sm:$0x1] %v115
    %s117 = sadd.s32 %s72, 5
    %s118 = sld [smem:[#allocation3 + %s117]]
    %p119 = scmp.gt.s32.totalorder %s118, 0
    %s120 = scalar_select %p119, %s118, 0
    %p121 = scmp.lt.s32.totalorder %s120, 49
    %s122 = scalar_select %p121, %s120, 49
    %s123 = scalar_lea.vmem [#allocation9], %s122
    %v124 = vld [vmem:[%s123] sm:$0x1]
    %125 = vst [vmem:[#allocation10 + $0x5] sm:$0x1] %v124
    %s126 = sadd.s32 %s72, 6
    %s127 = sld [smem:[#allocation3 + %s126]]
    %p128 = scmp.gt.s32.totalorder %s127, 0
    %s129 = scalar_select %p128, %s127, 0
    %p130 = scmp.lt.s32.totalorder %s129, 49
    %s131 = scalar_select %p130, %s129, 49
    %s132 = scalar_lea.vmem [#allocation9], %s131
    %v133 = vld [vmem:[%s132] sm:$0x1]
    %134 = vst [vmem:[#allocation10 + $0x6] sm:$0x1] %v133
    %s135 = sadd.s32 %s72, 7
    %s136 = sld [smem:[#allocation3 + %s135]]
    %p137 = scmp.gt.s32.totalorder %s136, 0
    %s138 = scalar_select %p137, %s136, 0
    %p139 = scmp.lt.s32.totalorder %s138, 49
    %s140 = scalar_select %p139, %s138, 49
    %s141 = scalar_lea.vmem [#allocation9], %s140
    %v142 = vld [vmem:[%s141] sm:$0x1]
    %143 = vst [vmem:[#allocation10 + $0x7] sm:$0x1] %v142
    %v144 = vld [vmem:[#allocation4] sm:$0xff]
    %v145 = vld [vmem:[#allocation7] sm:$0xff]
    %v146 = vld [vmem:[#allocation7 + $0x8] sm:$0xff]
    %v147 = vld [vmem:[#allocation7 + $0x10] sm:$0xff]
    %v148 = vld [vmem:[#allocation7 + $0x18] sm:$0xff]
    %v149 = vld [vmem:[#allocation7 + $0x20] sm:$0xff]
    %v150 = vld [vmem:[#allocation7 + $0x28] sm:$0xff]
    %v151 = vld [vmem:[#allocation7 + $0x30] sm:$0xff]
    %v152 = vld [vmem:[#allocation7 + $0x38] sm:$0xff]
    %v153 = vld [vmem:[#allocation7 + $0x40] sm:$0xff]
    %v154 = vld [vmem:[#allocation7 + $0x48] sm:$0xff]
    %v155 = vld [vmem:[#allocation7 + $0x50] sm:$0xff]
    %v156 = vld [vmem:[#allocation7 + $0x58] sm:$0xff]
    %v157 = vld [vmem:[#allocation7 + $0x60] sm:$0xff]
    %v158 = vld [vmem:[#allocation7 + $0x68] sm:$0xff]
    %v159 = vld [vmem:[#allocation7 + $0x70] sm:$0xff]
    %v160 = vld [vmem:[#allocation7 + $0x78] sm:$0xff]
    %v161 = vld [vmem:[#allocation10] sm:$0xff]
    %v162 = vld [vmem:[%s3] sm:$0x1]
    %v164 = vperm.slane %v162, 0
    %166 = vmatpush.msra.mxu0 %v160
    %167 = vmatpush.msra.mxu0 %v159
    %168 = vmatpush.msra.mxu0 %v158
    %169 = vmatpush.msra.mxu0 %v157
    %170 = vmatpush.msra.mxu0 %v156
    %171 = vmatpush.msra.mxu0 %v155
    %172 = vmatpush.msra.mxu0 %v154
    %173 = vmatpush.msra.mxu0 %v153
    %174 = vmatpush.msra.mxu0 %v152
    %175 = vmatpush.msra.mxu0 %v151
    %176 = vmatpush.msra.mxu0 %v150
    %177 = vmatpush.msra.mxu0 %v149
    %178 = vmatpush.msra.mxu0 %v148
    %179 = vmatpush.msra.mxu0 %v147
    %180 = vmatpush.msra.mxu0 %v146
    %181 = vmatpush.msra.mxu0 %v145
    %182 = vmatmul.f32.gmra.mxu0 %v144
    %v183 = vpop.f32.mrf.mxu0
    %v184 = vadd.f32 %v164, %v183
    %185 = vdwg.mxu0
    %v186 = vmul.f32 %v161, %v184
    %187 = vst [vmem:[#allocation10] sm:$0xff] %v186
    // Predicated region
    $region30: #{tpu_custom_call.1} parent=1 // pred_check
      _
    $region31: #{tpu_custom_call.1} parent=1 // pred_check_branch
      %189 = sbr.rel (0) target = $region33
    $region32: #{tpu_custom_call.1} parent=1 // pred_region
      %191 = vsyncadd [#allocation6], 0
      %s193 = sshll.u32 [#allocation10], 4
      %s194 = int_to_ptr.vmem [resolvable:$true] %s193
      %s195 = sshll.u32 %s5, 4
      %s196 = int_to_ptr.hbm [resolvable:$true] %s195
      %198 = dma.vmem_to_hbm [thread:$0]  %s194, 128, %s196, [#allocation6]
    $region33: #{tpu_custom_call.1} parent=1 // pred_fallthru
      _
    // Predicated region
    $region34: #{tpu_custom_call.1} parent=1 // pred_check
      _
    $region35: #{tpu_custom_call.1} parent=1 // pred_check_branch
      %200 = sbr.rel (0) target = $region37
    $region36: #{tpu_custom_call.1} parent=1 // pred_region
      %202 = dma.done [#allocation6], 128
    $region37: #{tpu_custom_call.1} parent=1 // pred_fallthru
      _
    %203 = vsyncpa [#allocation5], 1
    %204 = vsyncpa [#allocation8], 1
    %205 = vsyncpa [#allocation6], 1

</llo_original>
